<compile_context>
chip_gen: v7x
topology: tpu7x:2x2x1
jax: 0.10.0
libtpu: 0.0.40
codegen_flags: <defaults>
</compile_context>

<pallas_src>
import jax
import jax.numpy as jnp
from jax.experimental import pallas as pl
from jax.experimental.pallas import tpu as pltpu


# -----------------------------------------------------------------------------
# Kernels
# -----------------------------------------------------------------------------

def _scse_fused_kernel(u_ref, m_ref, wsse_ref, o_ref):
    """Single-pass per-image SCSE: one HBM read of U, one HBM write of O.

    u_ref:    (1, C, HW)  one whole image (C on sublanes, HW on lanes).
    m_ref:    (C, C)      collapsed cSE matrix  W_excite @ W_squeeze  (f32).
    wsse_ref: (C, 1)      sSE 1x1-conv weight as a column (f32).
    """
    u = u_ref[0]                                                 # (C, HW)
    uf = u.astype(jnp.float32)
    hw = u.shape[1]

    # cSE gate: per-channel spatial mean (lane reduction) + a tiny
    # (C, C) x (C, 1) matvec on the MXU.  The module has no nonlinearity
    # between the squeeze and excitation 1x1 convs, so they collapse into a
    # single matrix M = W_ex @ W_sq (precomputed in the wrapper).
    mean_col = jnp.sum(uf, axis=1, keepdims=True) * (1.0 / hw)   # (C, 1)
    z = jax.nn.sigmoid(
        jnp.dot(m_ref[...], mean_col, preferred_element_type=jnp.float32)
    )                                                            # (C, 1)

    # sSE gate: per-pixel gate as a VPU multiply + cross-sublane (XLU) reduce.
    q = jax.nn.sigmoid(
        jnp.sum(uf * wsse_ref[...], axis=0, keepdims=True))      # (1, HW)

    # SCSE combine: U*z + U*q == U*(z + q)  (one broadcast add + one multiply).
    o_ref[0] = (uf * (z + q)).astype(o_ref.dtype)


def _scse_apply_kernel(u_ref, z_ref, wsse_ref, o_ref):
    """Tiled apply path: the cSE gate z is precomputed (batched) by XLA.

    u_ref: (1, C, T) HW tile; z_ref: (1, C, 1) f32 gate; wsse_ref: (C, 1) f32.
    NOTE: on the ragged last block of a cdiv grid the pad lanes may contain
    garbage; sigmoid/sum on them is strictly per-lane and those output lanes
    are masked on store, so they never pollute valid output.
    """
    uf = u_ref[0].astype(jnp.float32)                            # (C, T)
    q = jax.nn.sigmoid(
        jnp.sum(uf * wsse_ref[...], axis=0, keepdims=True))      # (1, T)
    o_ref[0] = (uf * (z_ref[0] + q)).astype(o_ref.dtype)


# -----------------------------------------------------------------------------
# Wrapper
# -----------------------------------------------------------------------------

def _vmem_limit_bytes():
    """Generation-aware scoped-VMEM limit (v7x: 64 MiB phys, v5e/v6e: 128 MiB)."""
    try:
        phys = int(pltpu.get_tpu_info().vmem_capacity_bytes)
    except Exception:
        phys = 64 * 1024 * 1024          # assume the smallest generation (v7x)
    return min((phys * 3) // 4, 96 * 1024 * 1024)


def _padded_block_bytes(c, lanes, dtype):
    """VMEM footprint of a (C, lanes) block incl. sublane / 128-lane padding."""
    itemsize = jnp.dtype(dtype).itemsize
    sub = 8 * max(1, 4 // itemsize)      # sublane packing granularity per dtype
    c_pad = -(-c // sub) * sub
    l_pad = -(-lanes // 128) * 128
    return c_pad * l_pad * itemsize


def _choose_hw_tile(hw, c, vmem_limit, max_tile_lanes=None):
    """Lane-dense HW tile for the tiled path, sized from the VMEM budget."""
    per_lane_f32 = (-(-c // 8) * 8) * 4                      # f32 bytes per lane
    budget = max(vmem_limit // 10, 512 * 1024)               # in+out dbuf + temps
    max_lanes = max(128, (budget // per_lane_f32) // 128 * 128)
    if max_tile_lanes is not None:                           # test / tuning knob
        max_lanes = max(128, min(max_lanes, (max_tile_lanes // 128) * 128))
    if hw <= max_lanes:
        return hw          # one full-extent block (any HW size is legal)
    return max_lanes       # multiple of 128; ragged last block is masked


def _scse_forward_impl(u_nchw, w_squeeze, w_excite, w_sse,
                       donate_input=False, max_tile_lanes=None):
    """SCSE forward.

    u_nchw:    (N, C, H, W) input (PyTorch NCHW convention).
    w_squeeze: (C//4, C)    Conv_Squeeze 1x1 weight (bias-free).
    w_excite:  (C, C//4)    Conv_Excitation 1x1 weight (bias-free).
    w_sse:     (1, C)       sSE Conv1x1 weight (bias-free).
    """
    n, c, h, w = u_nchw.shape
    hw = h * w
    u = u_nchw.reshape(n, c, hw)      # free reshape: (N, C, HW), HW on lanes

    # Collapse the two bias-free 1x1 convs (no ReLU in between) into one (C, C)
    # matrix; tiny, computed once in f32.
    m = w_excite.astype(jnp.float32) @ w_squeeze.astype(jnp.float32)   # (C, C)
    w_sse_col = w_sse.reshape(c, 1).astype(jnp.float32)                # (C, 1)

    vmem_limit = _vmem_limit_bytes()
    io_alias = {0: 0} if donate_input else {}
    # TODO(synk): flip donate_input=True at call sites that can donate U so the
    # output reuses its HBM buffer (capacity win; leave off for non-donated args
    # or XLA inserts a defensive copy).

    # ---- fused single-pass path ---------------------------------------------
    blk = _padded_block_bytes(c, hw, u.dtype)
    f32_slab = _padded_block_bytes(c, hw, jnp.float32)
    # 2x double-buffered in + 2x out + headroom for block-sized f32 temporaries.
    fused_vmem_est = (4 * blk + 6 * f32_slab
                      + 4 * _padded_block_bytes(c, c, jnp.float32))
    # Require n >= 2 so at least two parallel grid blocks exist and both v7x
    # TensorCores (sharing the 3.2 TB/s HBM pipe) stay busy.
    use_fused = (n >= 2 and max_tile_lanes is None
                 and fused_vmem_est <= vmem_limit - (8 << 20))

    if use_fused:
        out = pl.pallas_call(
            _scse_fused_kernel,
            out_shape=jax.ShapeDtypeStruct((n, c, hw), u.dtype),
            grid_spec=pltpu.PrefetchScalarGridSpec(
                num_scalar_prefetch=0,
                grid=(n,),
                in_specs=[
                    pl.BlockSpec((1, c, hw), lambda b: (b, 0, 0)),
                    pl.BlockSpec((c, c), lambda b: (0, 0)),
                    pl.BlockSpec((c, 1), lambda b: (0, 0)),
                ],
                out_specs=pl.BlockSpec((1, c, hw), lambda b: (b, 0, 0)),
            ),
            compiler_params=pltpu.CompilerParams(
                dimension_semantics=("parallel",),
                vmem_limit_bytes=vmem_limit,
            ),
            input_output_aliases=io_alias,
        )(u, m, w_sse_col)
        return out.reshape(n, c, h, w)

    # ---- tiled fallback (3 HBM passes) --------------------------------------
    # cSE gate hoisted out of the grid; f32 accumulation fuses into the reduce
    # (no f32 copy of U in HBM for bf16 inputs), and z stays f32 end to end.
    mean = jnp.mean(u, axis=2, dtype=jnp.float32)                      # (N, C)
    z = jax.nn.sigmoid(mean @ m.T).reshape(n, c, 1)                    # f32

    tile_hw = _choose_hw_tile(hw, c, vmem_limit, max_tile_lanes)
    grid = (n, pl.cdiv(hw, tile_hw))

    out = pl.pallas_call(
        _scse_apply_kernel,
        out_shape=jax.ShapeDtypeStruct((n, c, hw), u.dtype),
        grid_spec=pltpu.PrefetchScalarGridSpec(
            num_scalar_prefetch=0,
            grid=grid,
            in_specs=[
                # TODO(synk): sweep pipeline_mode=pl.Buffered(3) on this spec.
                pl.BlockSpec((1, c, tile_hw), lambda b, t: (b, 0, t)),
                pl.BlockSpec((1, c, 1), lambda b, t: (b, 0, 0)),
                pl.BlockSpec((c, 1), lambda b, t: (0, 0)),
            ],
            out_specs=pl.BlockSpec((1, c, tile_hw), lambda b, t: (b, 0, t)),
        ),
        compiler_params=pltpu.CompilerParams(
            dimension_semantics=("parallel", "parallel"),
            vmem_limit_bytes=vmem_limit,
        ),
        input_output_aliases=io_alias,
    )(u, z, w_sse_col)
    return out.reshape(n, c, h, w)


scse_forward = jax.jit(_scse_forward_impl,
                       static_argnames=("donate_input", "max_tile_lanes"))


# -----------------------------------------------------------------------------
# Reference + test
# -----------------------------------------------------------------------------

def _reference_scse(u_nchw, w_squeeze, w_excite, w_sse):
    """Pure-JAX reference mirroring the PyTorch SCSE module exactly."""
    z = jnp.mean(u_nchw, axis=(2, 3))                    # cSE: avgpool
    z = z @ w_squeeze.T                                  # Conv_Squeeze (1x1)
    z = z @ w_excite.T                                   # Conv_Excitation (1x1)
    z = jax.nn.sigmoid(z)[:, :, None, None]
    u_cse = u_nchw * z
    q = jnp.einsum('nchw,oc->nohw', u_nchw, w_sse)       # sSE: 1x1 conv
    q = jax.nn.sigmoid(q)
    u_sse = u_nchw * q
    return u_cse + u_sse


if __name__ == "__main__":
    key = jax.random.PRNGKey(0)
    k_u1, k_u2, k_u3, k_sq, k_ex, k_sse = jax.random.split(key, 6)

    def check(u_nchw, c, max_tile_lanes=None, atol=5e-3, rtol=5e-3):
        w_squeeze = jax.random.normal(k_sq, (max(c // 4, 1), c), jnp.float32) * 0.5
        w_excite = jax.random.normal(k_ex, (c, max(c // 4, 1)), jnp.float32) * 0.5
        w_sse = jax.random.normal(k_sse, (1, c), jnp.float32) * 0.5
        out = scse_forward(u_nchw, w_squeeze, w_excite, w_sse,
                           max_tile_lanes=max_tile_lanes)
        out = jax.block_until_ready(out)
        ref = _reference_scse(u_nchw.astype(jnp.float32),
                              w_squeeze, w_excite, w_sse)
        assert out.shape == u_nchw.shape
        assert jnp.allclose(out.astype(jnp.float32), ref, atol=atol, rtol=rtol), \
            f"mismatch vs reference (shape={u_nchw.shape}, dtype={u_nchw.dtype})"

    # 1) Fused single-pass path (N>=2, whole image fits VMEM), f32.
    check(jax.random.normal(k_u1, (2, 4, 16, 16), jnp.float32), c=4)
    # 2) Tiled path, one full-extent HW block (N=1, HW=400 not a 128-multiple).
    check(jax.random.normal(k_u2, (1, 4, 20, 20), jnp.float32), c=4)
    # 3) Tiled path with a ragged cdiv grid (forced 128-lane tiles, 400=3*128+16).
    check(jax.random.normal(k_u2, (1, 4, 20, 20), jnp.float32), c=4,
          max_tile_lanes=128)
    # 4) Fused path with bf16 activations.
    check(jax.random.normal(k_u3, (2, 8, 16, 16), jnp.float32).astype(jnp.bfloat16),
          c=8, atol=5e-2, rtol=5e-2)

    print("KERNEL_OK")
</pallas_src>

<mosaic_0001>
module attributes {stable_mosaic.version = 11 : i64} {
  func.func @_scse_fused_kernel(%arg0: i32, %arg1: memref<1x4x256xf32, #tpu.memory_space<vmem>>, %arg2: memref<4x4xf32, #tpu.memory_space<vmem>>, %arg3: memref<4x1xf32, #tpu.memory_space<vmem>>, %arg4: memref<1x4x256xf32, #tpu.memory_space<vmem>>) attributes {dimension_semantics = [#tpu.dimension_semantics<parallel>], iteration_bounds = array<i64: 2>, scalar_prefetch = 0 : i64, scratch_operands = 0 : i64, tpu.core_type = #tpu.core_type<tc>, window_params = [{transform_indices = @transform_0, window_bounds = array<i64: 1, 4, 256>}, {pipeline_mode = #tpu.pipeline_mode<synchronous>, transform_indices = @transform_1, window_bounds = array<i64: 4, 4>}, {pipeline_mode = #tpu.pipeline_mode<synchronous>, transform_indices = @transform_2, window_bounds = array<i64: 4, 1>}, {transform_indices = @transform_3, window_bounds = array<i64: 1, 4, 256>}]} {
    %c0 = arith.constant 0 : index
    %c0_0 = arith.constant 0 : index
    %c0_1 = arith.constant 0 : index
    %0 = vector.load %arg1[%c0, %c0_0, %c0_1] : memref<1x4x256xf32, #tpu.memory_space<vmem>>, vector<1x4x256xf32>
    %1 = vector.shape_cast %0 : vector<1x4x256xf32> to vector<4x256xf32>
    %cst = arith.constant dense<0.000000e+00> : vector<4xf32>
    %2 = vector.multi_reduction <add>, %1, %cst [1] : vector<4x256xf32> to vector<4xf32>
    %3 = vector.shape_cast %2 : vector<4xf32> to vector<4x1xf32>
    %cst_2 = arith.constant 3.906250e-03 : f32
    %4 = vector.broadcast %cst_2 : f32 to vector<4x1xf32>
    %5 = arith.mulf %3, %4 : vector<4x1xf32>
    %c0_3 = arith.constant 0 : index
    %c0_4 = arith.constant 0 : index
    %6 = vector.load %arg2[%c0_3, %c0_4] : memref<4x4xf32, #tpu.memory_space<vmem>>, vector<4x4xf32>
    %cst_5 = arith.constant dense<0.000000e+00> : vector<4x1xf32>
    %7 = tpu.matmul %6, %5, %cst_5 {dimension_numbers = #tpu.dot_dimension_numbers<[1], [0], [0], [1], [0, 0, 1, 1], [], []>} : vector<4x4xf32>, vector<4x1xf32>, vector<4x1xf32> -> vector<4x1xf32>
    %8 = arith.negf %7 : vector<4x1xf32>
    %9 = math.exp %8 : vector<4x1xf32>
    %cst_6 = arith.constant 1.000000e+00 : f32
    %10 = vector.broadcast %cst_6 : f32 to vector<4x1xf32>
    %11 = arith.addf %10, %9 : vector<4x1xf32>
    %12 = arith.divf %10, %11 : vector<4x1xf32>
    %c0_7 = arith.constant 0 : index
    %c0_8 = arith.constant 0 : index
    %13 = vector.load %arg3[%c0_7, %c0_8] : memref<4x1xf32, #tpu.memory_space<vmem>>, vector<4x1xf32>
    %14 = vector.broadcast %13 : vector<4x1xf32> to vector<4x256xf32>
    %15 = arith.mulf %1, %14 : vector<4x256xf32>
    %cst_9 = arith.constant dense<0.000000e+00> : vector<256xf32>
    %16 = vector.multi_reduction <add>, %15, %cst_9 [0] : vector<4x256xf32> to vector<256xf32>
    %17 = vector.shape_cast %16 : vector<256xf32> to vector<1x256xf32>
    %18 = arith.negf %17 : vector<1x256xf32>
    %19 = math.exp %18 : vector<1x256xf32>
    %cst_10 = arith.constant 1.000000e+00 : f32
    %20 = vector.broadcast %cst_10 : f32 to vector<1x256xf32>
    %21 = arith.addf %20, %19 : vector<1x256xf32>
    %22 = arith.divf %20, %21 : vector<1x256xf32>
    %23 = vector.broadcast %12 : vector<4x1xf32> to vector<4x256xf32>
    %24 = vector.broadcast %22 : vector<1x256xf32> to vector<4x256xf32>
    %25 = arith.addf %23, %24 : vector<4x256xf32>
    %26 = arith.mulf %1, %25 : vector<4x256xf32>
    %c0_11 = arith.constant 0 : index
    %c0_12 = arith.constant 0 : index
    %c0_13 = arith.constant 0 : index
    %27 = vector.load %arg4[%c0_11, %c0_12, %c0_13] : memref<1x4x256xf32, #tpu.memory_space<vmem>>, vector<1x4x256xf32>
    %28 = vector.shape_cast %27 : vector<1x4x256xf32> to vector<4x256xf32>
    %29 = vector.shape_cast %26 : vector<4x256xf32> to vector<1x4x256xf32>
    tpu.vector_store %arg4[%c0_11, %c0_12, %c0_13], %29 {strides = array<i32>} : memref<1x4x256xf32, #tpu.memory_space<vmem>>, vector<1x4x256xf32>,
    return
  }
  func.func @transform_0(%arg0: i32) -> (i32, i32, i32) {
    %c0_i32 = arith.constant 0 : i32
    %c0_i32_0 = arith.constant 0 : i32
    %c0_i32_1 = arith.constant 0 : i32
    return %arg0, %c0_i32, %c0_i32_0 : i32, i32, i32
  }
  func.func @transform_1(%arg0: i32) -> (i32, i32) {
    %c0_i32 = arith.constant 0 : i32
    %c0_i32_0 = arith.constant 0 : i32
    %c0_i32_1 = arith.constant 0 : i32
    return %c0_i32, %c0_i32_0 : i32, i32
  }
  func.func @transform_2(%arg0: i32) -> (i32, i32) {
    %c0_i32 = arith.constant 0 : i32
    %c0_i32_0 = arith.constant 0 : i32
    %c0_i32_1 = arith.constant 0 : i32
    return %c0_i32, %c0_i32_0 : i32, i32
  }
  func.func @transform_3(%arg0: i32) -> (i32, i32, i32) {
    %c0_i32 = arith.constant 0 : i32
    %c0_i32_0 = arith.constant 0 : i32
    %c0_i32_1 = arith.constant 0 : i32
    return %arg0, %c0_i32, %c0_i32_0 : i32, i32, i32
  }
}

</mosaic_0001>

<llo_original>
// kernel: _scse_forward_impl.1
$region0: #{_scse_forward_impl.1}
  #allocation0 [shape = 'u32[]', space=smem, size = 0x4, offset = 0x4, fixed_abs, tag = 'smem constant byte address 0x4 - core index']
  #allocation1 [shape = 'u32[144,128]{1,0:T(1,128)}', space=vmem, size = 0x12000, scoped, tag = 'internal scratch']
  %s0 = inlined_call_operand.vmem [shape: f32[2,4,256], index: 0, kind: input, shape index: {}]
  %s1 = inlined_call_operand.vmem [shape: f32[4,4], index: 1, kind: input, shape index: {}]
  %s2 = inlined_call_operand.vmem [shape: f32[4,1], index: 2, kind: input, shape index: {}]
  %s3 = inlined_call_operand.vmem [shape: f32[2,4,256], index: 3, kind: output, shape index: {}]
  %s4 = sld [smem:[#allocation0]]
  $region45: #{_scse_forward_impl.1} parent=0
    _
  %s6 = ssub.s32 1, %s4
  %s7 = scalar_select 0, %s6, %s4
  loop: start=0, step=1, limit=4
  $region2: #{_scse_forward_impl.1} parent=0 // loop_pre_header
    _
  $region3: #{_scse_forward_impl.1} parent=0 // loop_header
    %s9 = sphi 0, %s13
    %p10 = scmp.ge.s32.totalorder %s9, 4
    %s19 = sphi 0, %s21
    %s22 = sphi 0, %s19
    %s23 = sphi 0, %s22
    %s39 = sphi 0, %s23
    %s43 = sphi 0, %s43
    %s45 = sphi 0, %s43
    %s46 = sphi 0, %s45
    %s60 = sphi 0, %s46
    %s64 = sphi 0, %s64
    %s66 = sphi 0, %s64
    %s67 = sphi 0, %s66
    %s81 = sphi 0, %s67
    %s87 = sphi 0, %s89
    %s90 = sphi 0, %s87
    %s91 = sphi 0, %s90
    %s107 = sphi 0, %s91
  $region4: #{_scse_forward_impl.1} parent=0 // loop_header_branch
    %12 = sbr.rel (%p10) target = $region8
  $region5: #{_scse_forward_impl.1} parent=0 // loop_body
    %s14 = ssub.s32 %s9, 1
    %s15 = ssub.s32 %s9, 2
    %s16 = sadd.s32 %s9, 1
    %s17 = ssub.s32 %s9, %s16
    %p18 = scmp.eq.s32.totalorder %s17, 0
    %s20 = sadd.s32 %s19, 1
    %s21 = scalar_select %p18, %s19, %s20
    %p24 = pneg %p18
    %p25 = scmp.eq.s32.totalorder %s9, 1
    %p26 = por %p24, %p25
    %p27 = scmp.ne.s32.totalorder %s19, %s22
    %p28 = scmp.eq.s32.totalorder %s9, 0
    %p29 = por %p27, %p28
    %p30 = scmp.ne.s32.totalorder %s19, %s22
    %p31 = scmp.eq.s32.totalorder %s14, 1
    %p32 = por %p30, %p31
    %p33 = scmp.ne.s32.totalorder %s22, %s23
    %p34 = scmp.eq.s32.totalorder %s14, 0
    %p35 = por %p33, %p34
    %p36 = scmp.ne.s32.totalorder %s22, %s23
    %p37 = scmp.eq.s32.totalorder %s15, 1
    %p38 = por %p36, %p37
    %p40 = scmp.ne.s32.totalorder %s23, %s39
    %p41 = scmp.eq.s32.totalorder %s15, 0
    %p42 = por %p40, %p41
    %s44 = sadd.s32 %s43, 1
    %p47 = scmp.eq.s32.totalorder %s9, 1
    %p48 = scmp.ne.s32.totalorder %s43, %s45
    %p49 = scmp.eq.s32.totalorder %s9, 0
    %p50 = por %p48, %p49
    %p51 = scmp.ne.s32.totalorder %s43, %s45
    %p52 = scmp.eq.s32.totalorder %s14, 1
    %p53 = por %p51, %p52
    %p54 = scmp.ne.s32.totalorder %s45, %s46
    %p55 = scmp.eq.s32.totalorder %s14, 0
    %p56 = por %p54, %p55
    %p57 = scmp.ne.s32.totalorder %s45, %s46
    %p58 = scmp.eq.s32.totalorder %s15, 1
    %p59 = por %p57, %p58
    %p61 = scmp.ne.s32.totalorder %s46, %s60
    %p62 = scmp.eq.s32.totalorder %s15, 0
    %p63 = por %p61, %p62
    %s65 = sadd.s32 %s64, 1
    %p68 = scmp.eq.s32.totalorder %s9, 1
    %p69 = scmp.ne.s32.totalorder %s64, %s66
    %p70 = scmp.eq.s32.totalorder %s9, 0
    %p71 = por %p69, %p70
    %p72 = scmp.ne.s32.totalorder %s64, %s66
    %p73 = scmp.eq.s32.totalorder %s14, 1
    %p74 = por %p72, %p73
    %p75 = scmp.ne.s32.totalorder %s66, %s67
    %p76 = scmp.eq.s32.totalorder %s14, 0
    %p77 = por %p75, %p76
    %p78 = scmp.ne.s32.totalorder %s66, %s67
    %p79 = scmp.eq.s32.totalorder %s15, 1
    %p80 = por %p78, %p79
    %p82 = scmp.ne.s32.totalorder %s67, %s81
    %p83 = scmp.eq.s32.totalorder %s15, 0
    %p84 = por %p82, %p83
    %s85 = ssub.s32 %s9, %s16
    %p86 = scmp.eq.s32.totalorder %s85, 0
    %s88 = sadd.s32 %s87, 1
    %s89 = scalar_select %p86, %s87, %s88
    %p92 = pneg %p86
    %p93 = scmp.eq.s32.totalorder %s9, 1
    %p94 = por %p92, %p93
    %p95 = scmp.ne.s32.totalorder %s87, %s90
    %p96 = scmp.eq.s32.totalorder %s9, 0
    %p97 = por %p95, %p96
    %p98 = scmp.ne.s32.totalorder %s87, %s90
    %p99 = scmp.eq.s32.totalorder %s14, 1
    %p100 = por %p98, %p99
    %p101 = scmp.ne.s32.totalorder %s90, %s91
    %p102 = scmp.eq.s32.totalorder %s14, 0
    %p103 = por %p101, %p102
    %p104 = scmp.ne.s32.totalorder %s90, %s91
    %p105 = scmp.eq.s32.totalorder %s15, 1
    %p106 = por %p104, %p105
    %p108 = scmp.ne.s32.totalorder %s91, %s107
    %p109 = scmp.eq.s32.totalorder %s15, 0
    %p110 = por %p108, %p109
    %p111 = scmp.le.s32.totalorder 1, %s9
    %p112 = scmp.lt.s32.totalorder %s9, 3
    %p113 = pnand %p111, %p112
    %p114 = pneg %p113
    // Predicated region
    $region9: #{_scse_forward_impl.1} parent=5 // pred_check
      _
    $region10: #{_scse_forward_impl.1} parent=5 // pred_check_branch
      %116 = sbr.rel (%p113) target = $region12
    $region11: #{_scse_forward_impl.1} parent=5 // pred_region
      %s117 = ssub.s32 %s9, 1
      // Predicated region
      $region13: #{_scse_forward_impl.1} parent=11 // pred_check
        %p118 = pneg %p56
      $region14: #{_scse_forward_impl.1} parent=11 // pred_check_branch
        %120 = sbr.rel (%p118) target = $region16
      $region15: #{_scse_forward_impl.1} parent=11 // pred_region
        _
      $region16: #{_scse_forward_impl.1} parent=11 // pred_fallthru
        _
      // Predicated region
      $region17: #{_scse_forward_impl.1} parent=11 // pred_check
        %p121 = pneg %p77
      $region18: #{_scse_forward_impl.1} parent=11 // pred_check_branch
        %123 = sbr.rel (%p121) target = $region20
      $region19: #{_scse_forward_impl.1} parent=11 // pred_region
        _
      $region20: #{_scse_forward_impl.1} parent=11 // pred_fallthru
        _
    $region12: #{_scse_forward_impl.1} parent=5 // pred_fallthru
      _
    %p124 = scmp.lt.s32.totalorder %s9, 2
    // Predicated region
    $region21: #{_scse_forward_impl.1} parent=5 // pred_check
      %p125 = pneg %p124
    $region22: #{_scse_forward_impl.1} parent=5 // pred_check_branch
      %127 = sbr.rel (%p125) target = $region24
    $region23: #{_scse_forward_impl.1} parent=5 // pred_region
      // Predicated region
      $region25: #{_scse_forward_impl.1} parent=23 // pred_check
        %p128 = pneg %p29
      $region26: #{_scse_forward_impl.1} parent=23 // pred_check_branch
        %130 = sbr.rel (%p128) target = $region28
      $region27: #{_scse_forward_impl.1} parent=23 // pred_region
        %p131 = scmp.lt.s32.totalorder %s9, 1
        %s132 = scalar_select %p131, %s9, 1
        %s133 = smul.addr %s132, 2
        %s134 = smul.addr %s133, 4
        %s135 = scalar_lea.vmem %s0, %s134
      $region28: #{_scse_forward_impl.1} parent=23 // pred_fallthru
        _
    $region24: #{_scse_forward_impl.1} parent=5 // pred_fallthru
      _
    %p136 = scmp.le.s32.totalorder 1, %s9
    %p137 = scmp.lt.s32.totalorder %s9, 3
    %p138 = pnand %p136, %p137
    %p139 = pneg %p138
    // Predicated region
    $region29: #{_scse_forward_impl.1} parent=5 // pred_check
      _
    $region30: #{_scse_forward_impl.1} parent=5 // pred_check_branch
      %141 = sbr.rel (%p138) target = $region32
    $region31: #{_scse_forward_impl.1} parent=5 // pred_region
      %s142 = ssub.s32 %s9, 1
      %p143 = scmp.lt.s32.totalorder %s14, 1
      %s144 = scalar_select %p143, %s14, 1
      %s145 = smul.addr %s144, 2
      %s146 = smul.addr %s145, 4
      %s147 = scalar_lea.vmem %s0, %s146
      %p148 = pneg %p35
      %p149 = pneg %p32
      %p150 = pneg %p56
      %p151 = pneg %p53
      %p152 = pneg %p77
      %p153 = pneg %p74
      %p154 = pneg %p103
      %p155 = pneg %p100
      %p156 = scmp.lt.s32.totalorder %s14, 1
      %s157 = scalar_select %p156, %s14, 1
      %s158 = smul.addr %s157, 2
      %s159 = smul.addr %s158, 4
      %s160 = scalar_lea.vmem %s3, %s159
      %p161 = scmp.lt.s32.totalorder %s14, 1
      %s162 = scalar_select %p161, %s14, 1
      %s163 = smul.addr %s162, 2
      %s164 = smul.addr %s163, 4
      %s165 = scalar_lea.vmem %s0, %s164
      %p166 = scmp.lt.s32.totalorder %s14, 1
      %s167 = scalar_select %p166, %s14, 1
      %s168 = smul.addr %s167, 2
      %s169 = smul.addr %s168, 4
      %s170 = scalar_lea.vmem %s3, %s169
      %v171 = vld [vmem:[%s165] sm:$0xff]
      %v173 = vcombine.high %v171, %v171
      %vm175 = vcmask 1043456
      %v176 = vsel %vm175, %v171, 0.0
      %v177 = vsel %vm175, %v173, 0.0
      %v178 = vadd.f32 %v176, %v177
      %179 = vadd.xlane.f32.xlu0 %v178
      %v180 = vpop.xlane.xlu0 %179
      %v181 = vmul.f32 %v180, 0.00390625
      %v182 = vld [vmem:[%s1] sm:$0xf]
      %vm183 = vcmask 31744
      %v185 = vsel %vm183, %v182, 0
      %v188 = vsel %vm175, %v181, 0
      %190 = vmatprep.subr.mxu0 0.0
      %191 = vmatpush1.msra.mxu0 %v188
      %192 = vmatprep.subr.mxu0 0.0
      %193 = vmatpush1.msra.mxu0 0.0
      %194 = vmatprep.subr.mxu0 0.0
      %195 = vmatpush1.msra.mxu0 0.0
      %196 = vmatprep.subr.mxu0 0.0
      %197 = vmatpush1.msra.mxu0 0.0
      %198 = vmatprep.subr.mxu0 0.0
      %199 = vmatpush1.msra.mxu0 0.0
      %200 = vmatprep.subr.mxu0 0.0
      %201 = vmatpush1.msra.mxu0 0.0
      %202 = vmatprep.subr.mxu0 0.0
      %203 = vmatpush1.msra.mxu0 0.0
      %204 = vmatprep.subr.mxu0 0.0
      %205 = vmatpush1.msra.mxu0 0.0
      %206 = vmatprep.subr.mxu0 0.0
      %207 = vmatpush1.msra.mxu0 0.0
      %208 = vmatprep.subr.mxu0 0.0
      %209 = vmatpush1.msra.mxu0 0.0
      %210 = vmatprep.subr.mxu0 0.0
      %211 = vmatpush1.msra.mxu0 0.0
      %212 = vmatprep.subr.mxu0 0.0
      %213 = vmatpush1.msra.mxu0 0.0
      %214 = vmatprep.subr.mxu0 0.0
      %215 = vmatpush1.msra.mxu0 0.0
      %216 = vmatprep.subr.mxu0 0.0
      %217 = vmatpush1.msra.mxu0 0.0
      %218 = vmatprep.subr.mxu0 0.0
      %219 = vmatpush1.msra.mxu0 0.0
      %220 = vmatprep.subr.mxu0 0.0
      %221 = vmatpush1.msra.mxu0 0.0
      %222 = vmatprep.subr.mxu0 0.0
      %223 = vmatpush1.msra.mxu0 0.0
      %224 = vmatprep.subr.mxu0 0.0
      %225 = vmatpush1.msra.mxu0 0.0
      %226 = vmatprep.subr.mxu0 0.0
      %227 = vmatpush1.msra.mxu0 0.0
      %228 = vmatprep.subr.mxu0 0.0
      %229 = vmatpush1.msra.mxu0 0.0
      %230 = vmatprep.subr.mxu0 0.0
      %231 = vmatpush1.msra.mxu0 0.0
      %232 = vmatprep.subr.mxu0 0.0
      %233 = vmatpush1.msra.mxu0 0.0
      %234 = vmatprep.subr.mxu0 0.0
      %235 = vmatpush1.msra.mxu0 0.0
      %236 = vmatprep.subr.mxu0 0.0
      %237 = vmatpush1.msra.mxu0 0.0
      %238 = vmatprep.subr.mxu0 0.0
      %239 = vmatpush1.msra.mxu0 0.0
      %240 = vmatprep.subr.mxu0 0.0
      %241 = vmatpush1.msra.mxu0 0.0
      %242 = vmatprep.subr.mxu0 0.0
      %243 = vmatpush1.msra.mxu0 0.0
      %244 = vmatprep.subr.mxu0 0.0
      %245 = vmatpush1.msra.mxu0 0.0
      %246 = vmatprep.subr.mxu0 0.0
      %247 = vmatpush1.msra.mxu0 0.0
      %248 = vmatprep.subr.mxu0 0.0
      %249 = vmatpush1.msra.mxu0 0.0
      %250 = vmatprep.subr.mxu0 0.0
      %251 = vmatpush1.msra.mxu0 0.0
      %252 = vmatprep.subr.mxu0 0.0
      %253 = vmatpush1.msra.mxu0 0.0
      %254 = vmatprep.mubr.f32.mxu0 0.0
      %255 = vmatmul.mubr.f32.gmra.mrb[0].mxu0 %v185
      %v256 = vpop.f32.mrb[0].mxu0
      %v257 = vadd.f32 0.0, %v256
      %v258 = vpop.f32.mrb[0].mxu0
      %259 = vdwg.mxu0
      %v260 = vxor.u32 %v257, 2147483648
      %v261 = vmul.f32 %v260, 1.442695
      %v262 = vpow.pop %v261
      %v263 = vadd.f32 %v262, 1.0
      %v264 = vrcp.pop %v263
      %v265 = vmul.f32 1.0, %v264
      %v266 = vld [vmem:[%s2] sm:$0xf]
      %268 = vset.pattern.permute.xlu0 0
      %269 = vperm.xlu0 %268, %v266
      %v270 = vpop.permute.xlu0 %269
      %v272 = vunpack.c.l.s4 839922192
      %v273 = vunpack.c.0.s8 %v272
      %v274 = vlaneseq
      %v275 = vshrl.u32 %v274, 7
      %v276 = vsub.s32 %v273, %v275
      %v277 = vrot.slane %v270, %v276
      %v279 = vmul.f32 %v171, %v277
      %v281 = vcombine.high %v279, %v279
      %v283 = vsel %vm175, %v279, 0.0
      %v284 = vrot.slane %v283, 4
      %v285 = vadd.f32 %v283, %v284
      %v286 = vrot.slane %v285, 2
      %v287 = vadd.f32 %v285, %v286
      %v288 = vrot.slane %v287, 1
      %v289 = vadd.f32 %v287, %v288
      %v290 = vsel %vm175, %v281, 0.0
      %v291 = vrot.slane %v290, 4
      %v292 = vadd.f32 %v290, %v291
      %v293 = vrot.slane %v292, 2
      %v294 = vadd.f32 %v292, %v293
      %v295 = vrot.slane %v294, 1
      %v296 = vadd.f32 %v294, %v295
      %v297 = vxor.u32 %v289, 2147483648
      %v298 = vxor.u32 %v296, 2147483648
      %v299 = vmul.f32 %v297, 1.442695
      %v300 = vpow.pop %v299
      %v301 = vmul.f32 %v298, 1.442695
      %v302 = vpow.pop %v301
      %v303 = vadd.f32 %v300, 1.0
      %v304 = vadd.f32 %v302, 1.0
      %v305 = vrcp.pop %v303
      %v306 = vmul.f32 1.0, %v305
      %v307 = vrcp.pop %v304
      %v308 = vmul.f32 1.0, %v307
      %310 = vset.pattern.permute.xlu0 0
      %311 = vperm.xlu0 %310, %v265
      %v312 = vpop.permute.xlu0 %311
      %v314 = vadd.f32 %v312, %v306
      %v315 = vadd.f32 %v312, %v308
      %v318 = vcombine.low %v314, %v315
      %v320 = vmul.f32 %v171, %v318
      %321 = vst [vmem:[%s170] sm:$0xff] %v320
      %p322 = scmp.lt.s32.totalorder %s14, 1
      %s323 = scalar_select %p322, %s14, 1
      %s324 = smul.addr %s323, 2
      %s325 = smul.addr %s324, 4
      %s326 = scalar_lea.vmem %s3, %s325
      // Predicated region
      $region33: #{_scse_forward_impl.1} parent=31 // pred_check
        %p327 = pneg %p100
      $region34: #{_scse_forward_impl.1} parent=31 // pred_check_branch
        %329 = sbr.rel (%p327) target = $region36
      $region35: #{_scse_forward_impl.1} parent=31 // pred_region
        _
      $region36: #{_scse_forward_impl.1} parent=31 // pred_fallthru
        _
    $region32: #{_scse_forward_impl.1} parent=5 // pred_fallthru
      _
    %p330 = scmp.le.s32.totalorder 2, %s9
    // Predicated region
    $region37: #{_scse_forward_impl.1} parent=5 // pred_check
      %p331 = pneg %p330
    $region38: #{_scse_forward_impl.1} parent=5 // pred_check_branch
      %333 = sbr.rel (%p331) target = $region40
    $region39: #{_scse_forward_impl.1} parent=5 // pred_region
      %s334 = ssub.s32 %s9, 2
      // Predicated region
      $region41: #{_scse_forward_impl.1} parent=39 // pred_check
        %p335 = pneg %p106
      $region42: #{_scse_forward_impl.1} parent=39 // pred_check_branch
        %337 = sbr.rel (%p335) target = $region44
      $region43: #{_scse_forward_impl.1} parent=39 // pred_region
        %p338 = scmp.lt.s32.totalorder %s15, 1
        %s339 = scalar_select %p338, %s15, 1
        %s340 = smul.addr %s339, 2
        %s341 = smul.addr %s340, 4
        %s342 = scalar_lea.vmem %s3, %s341
      $region44: #{_scse_forward_impl.1} parent=39 // pred_fallthru
        _
    $region40: #{_scse_forward_impl.1} parent=5 // pred_fallthru
      _
  $region6: #{_scse_forward_impl.1} parent=0 // loop_footer
    %s13 = sadd.s32 1, %s9
  $region7: #{_scse_forward_impl.1} parent=0 // loop_footer_branch
    %8 = sbr.rel target = $region3
  $region8: #{_scse_forward_impl.1} parent=0 // loop_exit
    _

</llo_original>
